<compile_context>
chip_gen: v7x
topology: tpu7x:2x2x1
jax: 0.10.0
libtpu: 0.0.40
codegen_flags: <defaults>
</compile_context>

<pallas_src>
import jax
import jax.numpy as jnp
from jax.experimental import pallas as pl
from jax.experimental.pallas import tpu as pltpu


def _round_up(x, m):
    return ((x + m - 1) // m) * m


def _num_tensorcores_per_chip():
    """Best-effort detection: v7x has 2 TensorCores/chip, v5e/v6e have 1."""
    try:
        kind = jax.devices()[0].device_kind.lower()
    except Exception:
        return 1
    return 2 if "v7" in kind else 1


def _pick_num_steps(b):
    tc = _num_tensorcores_per_chip()
    if tc >= 2 and b >= 2 and b % 2 == 0:
        return 2
    return 1


def gin_kernel(adj_ref, x_ref, w1_ref, b1_ref, w2_ref, b2_ref, out_ref):
    """GIN layer for one group of graphs (everything resident in VMEM).

    adj_ref : [1, M, M]     bf16, block-diagonal, pre-binarized & transposed:
                            adj[i, j] = 1  iff edge j->i within the same graph
    x_ref   : [1, M, DinP]  bf16 node features (graphs stacked along M)
    w1_ref  : [DinP, DoutP] bf16     b1_ref : [1, DoutP] f32
    w2_ref  : [DoutP, DoutP] bf16    b2_ref : [1, DoutP] f32
    out_ref : [1, M, DoutP] bf16
    """
    x = x_ref[0]                                           # [M, DinP] bf16

    # Neighborhood sum: agg = adj^T_blockdiag @ x, one bf16 MXU matmul with
    # f32 accumulation (binary adjacency is exact in bf16).
    agg = jnp.dot(adj_ref[0], x, preferred_element_type=jnp.float32)

    # GIN combine: (1 + eps) * x + agg, eps = 0.
    h = x.astype(jnp.float32) + agg

    # gin_nn: Linear -> ReLU -> Linear   (bf16 MXU operands, f32 accumulate)
    z1 = jnp.dot(h.astype(jnp.bfloat16), w1_ref[...],
                 preferred_element_type=jnp.float32) + b1_ref[...]
    z1 = jnp.maximum(z1, 0.0)
    z2 = jnp.dot(z1.astype(jnp.bfloat16), w2_ref[...],
                 preferred_element_type=jnp.float32) + b2_ref[...]

    # Final activation (self.act) = ReLU; lane-dense bf16 store (f32 accum,
    # cast only at the store).
    out_ref[0] = jnp.maximum(z2, 0.0).astype(out_ref.dtype)


def gcn_forward_batched(g, h, w1, b1, w2, b2, num_steps=None):
    """Batched forward: g [B, N, N], h [B, N, Din] -> [B, N, Dout] (f32).

    Glue (padding, binarize+transpose fused into the pad .set(), dtype casts,
    block-diagonal layout) in plain JAX; the hot path (aggregation matmul +
    2-layer MLP + activations) is a single Pallas kernel with 1 grid step on
    v5e/v6e and 2 parallel steps on v7x.
    """
    # TODO(synk): dropout is identity here (eval mode); training-mode dropout
    # would need pltpu.prng_seed / pltpu.prng_random_bits inside the kernel.
    b, n, din = h.shape
    dout = w1.shape[1]

    if num_steps is None:
        num_steps = _pick_num_steps(b)
    if b % num_steps != 0:
        num_steps = 1
    gpg = b // num_steps              # graphs per grid step

    n_p = _round_up(n, 16)            # bf16 sublane packing (16, 128) tiles
    din_p = _round_up(din, 128)       # lane-dense feature dims
    dout_p = _round_up(dout, 128)
    m = gpg * n_p                     # matmul M (and aggregation K) per step

    # Adjacency: binarize + transpose + cast to bf16 fused into the pad pass.
    # adj_t[b, j, i] = 1 iff g[b, i, j] > 0  (incoming-edge orientation of GIN).
    adj_t = jnp.zeros((b, n_p, n_p), jnp.bfloat16).at[:, :n, :n].set(
        (g > 0).astype(jnp.bfloat16).swapaxes(1, 2))

    # Block-diagonal adjacency per grid step: [num_steps, M, M]. Cross-graph
    # blocks stay zero, so graphs cannot contaminate each other.
    adj_bt = adj_t.reshape(num_steps, gpg, n_p, n_p)
    adj_bd = jnp.zeros((num_steps, m, m), jnp.bfloat16)
    for k in range(gpg):
        adj_bd = adj_bd.at[:, k * n_p:(k + 1) * n_p,
                           k * n_p:(k + 1) * n_p].set(adj_bt[:, k])

    # Node features stacked along M: [num_steps, M, DinP]. Zero padding keeps
    # the math exact (padded nodes have no edges / zero features; padded
    # feature lanes hit zero weight rows/cols and zero bias).
    x_p = jnp.zeros((b, n_p, din_p), jnp.bfloat16).at[:, :n, :din].set(
        h.astype(jnp.bfloat16)).reshape(num_steps, m, din_p)

    w1_p = jnp.zeros((din_p, dout_p), jnp.bfloat16).at[:din, :dout].set(
        w1.astype(jnp.bfloat16))
    b1_p = jnp.zeros((1, dout_p), jnp.float32).at[:, :dout].set(
        b1.reshape(1, dout).astype(jnp.float32))
    w2_p = jnp.zeros((dout_p, dout_p), jnp.bfloat16).at[:dout, :dout].set(
        w2.astype(jnp.bfloat16))
    b2_p = jnp.zeros((1, dout_p), jnp.float32).at[:, :dout].set(
        b2.reshape(1, dout).astype(jnp.float32))

    out_p = pl.pallas_call(
        gin_kernel,
        out_shape=jax.ShapeDtypeStruct((num_steps, m, dout_p), jnp.bfloat16),
        grid_spec=pltpu.PrefetchScalarGridSpec(
            num_scalar_prefetch=0,
            grid=(num_steps,),
            in_specs=[
                pl.BlockSpec((1, m, m), lambda i: (i, 0, 0)),
                pl.BlockSpec((1, m, din_p), lambda i: (i, 0, 0)),
                pl.BlockSpec((din_p, dout_p), lambda i: (0, 0)),
                pl.BlockSpec((1, dout_p), lambda i: (0, 0)),
                pl.BlockSpec((dout_p, dout_p), lambda i: (0, 0)),
                pl.BlockSpec((1, dout_p), lambda i: (0, 0)),
            ],
            out_specs=pl.BlockSpec((1, m, dout_p), lambda i: (i, 0, 0)),
        ),
        compiler_params=pltpu.CompilerParams(
            # Step axis is independent -> shards across v7x's 2 TensorCores;
            # with grid=(1,) on v5e/v6e it's a single fused step.
            dimension_semantics=("parallel",),
            vmem_limit_bytes=32 * 1024 * 1024,
        ),
    )(adj_bd, x_p, w1_p, b1_p, w2_p, b2_p)

    out = out_p.reshape(b, n_p, dout_p)[:, :n, :dout]
    return out.astype(jnp.float32)


def gcn_forward(g, h, w1, b1, w2, b2):
    """Single-graph forward matching GCN.forward(g, h) (eval mode, act=ReLU)."""
    return gcn_forward_batched(g[None], h[None], w1, b1, w2, b2)[0]


def reference_forward(g, h, w1, b1, w2, b2):
    """Pure-JAX f32 reference of the PyTorch module (eval mode, act=ReLU)."""
    adj_t = (g > 0).astype(jnp.float32).T
    agg = adj_t @ h
    z = h + agg
    z = jnp.maximum(z @ w1 + b1, 0.0)
    z = jnp.maximum(z @ w2 + b2, 0.0)
    return z


if __name__ == "__main__":
    key = jax.random.PRNGKey(0)
    k_g, k_m, k_h, k_w1, k_b1, k_w2, k_b2 = jax.random.split(key, 7)

    B = 8         # graphs batched into one pallas_call
    N = 16        # nodes per graph
    IN_DIM = 32   # input feature dim
    OUT_DIM = 32  # output feature dim

    # Random sparse-ish adjacencies (values > 0 define edges) and node features.
    g_vals = jax.random.uniform(k_g, (B, N, N))
    g_mask = jax.random.uniform(k_m, (B, N, N)) > 0.7
    g = jnp.where(g_mask, g_vals, 0.0).astype(jnp.float32)
    h = jax.random.normal(k_h, (B, N, IN_DIM), dtype=jnp.float32)

    # Deterministic parameter init (glorot-like), weights stored as [in, out].
    w1 = jax.random.normal(k_w1, (IN_DIM, OUT_DIM), dtype=jnp.float32) / jnp.sqrt(IN_DIM)
    b1 = jax.random.normal(k_b1, (1, OUT_DIM), dtype=jnp.float32) * 0.01
    w2 = jax.random.normal(k_w2, (OUT_DIM, OUT_DIM), dtype=jnp.float32) / jnp.sqrt(OUT_DIM)
    b2 = jax.random.normal(k_b2, (1, OUT_DIM), dtype=jnp.float32) * 0.01

    out = gcn_forward_batched(g, h, w1, b1, w2, b2)
    out = jax.block_until_ready(out)
    assert out.shape == (B, N, OUT_DIM)

    # Per-graph f32 reference. bf16 MXU operands (with f32 accumulation) and
    # the bf16 output store give sub-percent relative error vs pure f32; the
    # adjacency binarization itself is exact in bf16.
    ref = jax.vmap(lambda gi, hi: reference_forward(gi, hi, w1, b1, w2, b2))(g, h)
    max_err = float(jnp.max(jnp.abs(out - ref)))
    assert jnp.allclose(out, ref, atol=5e-2, rtol=2e-2), max_err

    # Single-graph wrapper (original module signature) agrees with batched path.
    out0 = jax.block_until_ready(gcn_forward(g[0], h[0], w1, b1, w2, b2))
    assert jnp.allclose(out0, out[0], atol=1e-6, rtol=1e-6)

    print("KERNEL_OK")
</pallas_src>

<mosaic_0001>
module attributes {stable_mosaic.version = 11 : i64} {
  func.func @gin_kernel(%arg0: i32, %arg1: memref<1x128x128xbf16, #tpu.memory_space<vmem>>, %arg2: memref<1x128x128xbf16, #tpu.memory_space<vmem>>, %arg3: memref<128x128xbf16, #tpu.memory_space<vmem>>, %arg4: memref<1x128xf32, #tpu.memory_space<vmem>>, %arg5: memref<128x128xbf16, #tpu.memory_space<vmem>>, %arg6: memref<1x128xf32, #tpu.memory_space<vmem>>, %arg7: memref<1x128x128xbf16, #tpu.memory_space<vmem>>) attributes {dimension_semantics = [#tpu.dimension_semantics<parallel>], iteration_bounds = array<i64: 1>, scalar_prefetch = 0 : i64, scratch_operands = 0 : i64, tpu.core_type = #tpu.core_type<tc>, window_params = [{transform_indices = @transform_0, window_bounds = array<i64: 1, 128, 128>}, {transform_indices = @transform_1, window_bounds = array<i64: 1, 128, 128>}, {pipeline_mode = #tpu.pipeline_mode<synchronous>, transform_indices = @transform_2, window_bounds = array<i64: 128, 128>}, {pipeline_mode = #tpu.pipeline_mode<synchronous>, transform_indices = @transform_3, window_bounds = array<i64: 1, 128>}, {pipeline_mode = #tpu.pipeline_mode<synchronous>, transform_indices = @transform_4, window_bounds = array<i64: 128, 128>}, {pipeline_mode = #tpu.pipeline_mode<synchronous>, transform_indices = @transform_5, window_bounds = array<i64: 1, 128>}, {transform_indices = @transform_6, window_bounds = array<i64: 1, 128, 128>}]} {
    %c0 = arith.constant 0 : index
    %c0_0 = arith.constant 0 : index
    %c0_1 = arith.constant 0 : index
    %0 = vector.load %arg2[%c0, %c0_0, %c0_1] : memref<1x128x128xbf16, #tpu.memory_space<vmem>>, vector<1x128x128xbf16>
    %1 = vector.shape_cast %0 : vector<1x128x128xbf16> to vector<128x128xbf16>
    %c0_2 = arith.constant 0 : index
    %c0_3 = arith.constant 0 : index
    %c0_4 = arith.constant 0 : index
    %2 = vector.load %arg1[%c0_2, %c0_3, %c0_4] : memref<1x128x128xbf16, #tpu.memory_space<vmem>>, vector<1x128x128xbf16>
    %3 = vector.shape_cast %2 : vector<1x128x128xbf16> to vector<128x128xbf16>
    %cst = arith.constant dense<0.000000e+00> : vector<128x128xf32>
    %4 = tpu.matmul %3, %1, %cst {dimension_numbers = #tpu.dot_dimension_numbers<[1], [0], [0], [1], [0, 0, 1, 1], [], []>} : vector<128x128xbf16>, vector<128x128xbf16>, vector<128x128xf32> -> vector<128x128xf32>
    %5 = arith.extf %1 : vector<128x128xbf16> to vector<128x128xf32>
    %6 = arith.addf %5, %4 : vector<128x128xf32>
    %7 = arith.truncf %6 : vector<128x128xf32> to vector<128x128xbf16>
    %c0_5 = arith.constant 0 : index
    %c0_6 = arith.constant 0 : index
    %8 = vector.load %arg3[%c0_5, %c0_6] : memref<128x128xbf16, #tpu.memory_space<vmem>>, vector<128x128xbf16>
    %cst_7 = arith.constant dense<0.000000e+00> : vector<128x128xf32>
    %9 = tpu.matmul %7, %8, %cst_7 {dimension_numbers = #tpu.dot_dimension_numbers<[1], [0], [0], [1], [0, 0, 1, 1], [], []>} : vector<128x128xbf16>, vector<128x128xbf16>, vector<128x128xf32> -> vector<128x128xf32>
    %c0_8 = arith.constant 0 : index
    %c0_9 = arith.constant 0 : index
    %10 = vector.load %arg4[%c0_8, %c0_9] : memref<1x128xf32, #tpu.memory_space<vmem>>, vector<1x128xf32>
    %11 = vector.broadcast %10 : vector<1x128xf32> to vector<128x128xf32>
    %12 = arith.addf %9, %11 : vector<128x128xf32>
    %cst_10 = arith.constant 0.000000e+00 : f32
    %13 = vector.broadcast %cst_10 : f32 to vector<128x128xf32>
    %14 = arith.maximumf %12, %13 : vector<128x128xf32>
    %15 = arith.truncf %14 : vector<128x128xf32> to vector<128x128xbf16>
    %c0_11 = arith.constant 0 : index
    %c0_12 = arith.constant 0 : index
    %16 = vector.load %arg5[%c0_11, %c0_12] : memref<128x128xbf16, #tpu.memory_space<vmem>>, vector<128x128xbf16>
    %cst_13 = arith.constant dense<0.000000e+00> : vector<128x128xf32>
    %17 = tpu.matmul %15, %16, %cst_13 {dimension_numbers = #tpu.dot_dimension_numbers<[1], [0], [0], [1], [0, 0, 1, 1], [], []>} : vector<128x128xbf16>, vector<128x128xbf16>, vector<128x128xf32> -> vector<128x128xf32>
    %c0_14 = arith.constant 0 : index
    %c0_15 = arith.constant 0 : index
    %18 = vector.load %arg6[%c0_14, %c0_15] : memref<1x128xf32, #tpu.memory_space<vmem>>, vector<1x128xf32>
    %19 = vector.broadcast %18 : vector<1x128xf32> to vector<128x128xf32>
    %20 = arith.addf %17, %19 : vector<128x128xf32>
    %cst_16 = arith.constant 0.000000e+00 : f32
    %21 = vector.broadcast %cst_16 : f32 to vector<128x128xf32>
    %22 = arith.maximumf %20, %21 : vector<128x128xf32>
    %23 = arith.truncf %22 : vector<128x128xf32> to vector<128x128xbf16>
    %c0_17 = arith.constant 0 : index
    %c0_18 = arith.constant 0 : index
    %c0_19 = arith.constant 0 : index
    %24 = vector.load %arg7[%c0_17, %c0_18, %c0_19] : memref<1x128x128xbf16, #tpu.memory_space<vmem>>, vector<1x128x128xbf16>
    %25 = vector.shape_cast %24 : vector<1x128x128xbf16> to vector<128x128xbf16>
    %26 = vector.shape_cast %23 : vector<128x128xbf16> to vector<1x128x128xbf16>
    tpu.vector_store %arg7[%c0_17, %c0_18, %c0_19], %26 {strides = array<i32>} : memref<1x128x128xbf16, #tpu.memory_space<vmem>>, vector<1x128x128xbf16>,
    return
  }
  func.func @transform_0(%arg0: i32) -> (i32, i32, i32) {
    %c0_i32 = arith.constant 0 : i32
    %c0_i32_0 = arith.constant 0 : i32
    %c0_i32_1 = arith.constant 0 : i32
    return %arg0, %c0_i32, %c0_i32_0 : i32, i32, i32
  }
  func.func @transform_1(%arg0: i32) -> (i32, i32, i32) {
    %c0_i32 = arith.constant 0 : i32
    %c0_i32_0 = arith.constant 0 : i32
    %c0_i32_1 = arith.constant 0 : i32
    return %arg0, %c0_i32, %c0_i32_0 : i32, i32, i32
  }
  func.func @transform_2(%arg0: i32) -> (i32, i32) {
    %c0_i32 = arith.constant 0 : i32
    %c0_i32_0 = arith.constant 0 : i32
    %c0_i32_1 = arith.constant 0 : i32
    return %c0_i32, %c0_i32_0 : i32, i32
  }
  func.func @transform_3(%arg0: i32) -> (i32, i32) {
    %c0_i32 = arith.constant 0 : i32
    %c0_i32_0 = arith.constant 0 : i32
    %c0_i32_1 = arith.constant 0 : i32
    return %c0_i32, %c0_i32_0 : i32, i32
  }
  func.func @transform_4(%arg0: i32) -> (i32, i32) {
    %c0_i32 = arith.constant 0 : i32
    %c0_i32_0 = arith.constant 0 : i32
    %c0_i32_1 = arith.constant 0 : i32
    return %c0_i32, %c0_i32_0 : i32, i32
  }
  func.func @transform_5(%arg0: i32) -> (i32, i32) {
    %c0_i32 = arith.constant 0 : i32
    %c0_i32_0 = arith.constant 0 : i32
    %c0_i32_1 = arith.constant 0 : i32
    return %c0_i32, %c0_i32_0 : i32, i32
  }
  func.func @transform_6(%arg0: i32) -> (i32, i32, i32) {
    %c0_i32 = arith.constant 0 : i32
    %c0_i32_0 = arith.constant 0 : i32
    %c0_i32_1 = arith.constant 0 : i32
    return %arg0, %c0_i32, %c0_i32_0 : i32, i32, i32
  }
}

</mosaic_0001>

<llo_original>
// kernel: tpu_custom_call.1
$region0: #{tpu_custom_call.1}
  #allocation0 [shape = 'u32[]', space=smem, size = 0x4, offset = 0x4, fixed_abs, tag = 'smem constant byte address 0x4 - core index']
  #allocation1 [shape = 'u32[144,128]{1,0:T(1,128)}', space=vmem, size = 0x12000, scoped, tag = 'internal scratch']
  %s0 = inlined_call_operand.hbm [shape: bf16[1,128,128], index: 0, kind: input, shape index: {}]
  %s1 = inlined_call_operand.hbm [shape: bf16[1,128,128], index: 1, kind: input, shape index: {}]
  %s2 = inlined_call_operand.hbm [shape: bf16[128,128], index: 2, kind: input, shape index: {}]
  %s3 = inlined_call_operand.vmem [shape: f32[1,128], index: 3, kind: input, shape index: {}]
  %s4 = inlined_call_operand.hbm [shape: bf16[128,128], index: 4, kind: input, shape index: {}]
  %s5 = inlined_call_operand.vmem [shape: f32[1,128], index: 5, kind: input, shape index: {}]
  %s6 = inlined_call_operand.hbm [shape: bf16[1,128,128], index: 6, kind: output, shape index: {}]
  %s7 = sld [smem:[#allocation0]]
  $region50: #{tpu_custom_call.1} parent=0
    _
  %s9 = ssub.s32 1, %s7
  %s10 = scalar_select 0, %s9, %s7
  $region1: #{tpu_custom_call.1} parent=0
    #allocation2 [shape = 'u8[32768]{0}', space=vmem, size = 0x8000, scoped, tag = 'input window, operand 0, single buffered']
    #allocation3 [shape = 's32[1]{0}', space=sflag, size = 0x4, scoped, tag = 'scoped memory for tpu_custom_call.1']
    #allocation4 [shape = 's32[1]{0}', space=sflag, size = 0x4, scoped, tag = 'scoped memory for tpu_custom_call.1']
    #allocation5 [shape = 'u8[32768]{0}', space=vmem, size = 0x8000, scoped, tag = 'input window, operand 1, single buffered']
    #allocation6 [shape = 's32[1]{0}', space=sflag, size = 0x4, scoped, tag = 'scoped memory for tpu_custom_call.1']
    #allocation7 [shape = 'u8[32768]{0}', space=vmem, size = 0x8000, scoped, tag = 'input window, operand 2, single buffered']
    #allocation8 [shape = 'u8[32768]{0}', space=vmem, size = 0x8000, scoped, tag = 'input window, operand 4, single buffered']
    #allocation9 [shape = 's32[1]{0}', space=sflag, size = 0x4, scoped, tag = 'scoped memory for tpu_custom_call.1']
    #allocation10 [shape = 'u8[32768]{0}', space=vmem, size = 0x8000, scoped, tag = 'output window, operand 0, single buffered']
    %11 = vsyncpa [#allocation3], 0
    %12 = vsyncpa [#allocation6], 0
    %13 = vsyncpa [#allocation9], 0
    %14 = vsyncpa [#allocation4], 0
    // Predicated region
    $region2: #{tpu_custom_call.1} parent=1 // pred_check
      _
    $region3: #{tpu_custom_call.1} parent=1 // pred_check_branch
      %16 = sbr.rel (0) target = $region5
    $region4: #{tpu_custom_call.1} parent=1 // pred_region
      %s18 = ssub.s32 1024, 1024
      %19 = vsyncadd [#allocation3], %s18
      %s20 = sshll.u32 [#allocation2], 4
      %s21 = int_to_ptr.vmem [resolvable:$true] %s20
      %26 = dma.hbm_to_vmem [thread:$0]  %s0, 1024, %s21, [#allocation3], 64, 64, 4
    $region5: #{tpu_custom_call.1} parent=1 // pred_fallthru
      _
    // Predicated region
    $region6: #{tpu_custom_call.1} parent=1 // pred_check
      _
    $region7: #{tpu_custom_call.1} parent=1 // pred_check_branch
      %28 = sbr.rel (0) target = $region9
    $region8: #{tpu_custom_call.1} parent=1 // pred_region
      %s30 = ssub.s32 1024, 1024
      %31 = vsyncadd [#allocation6], %s30
      %s32 = sshll.u32 [#allocation5], 4
      %s33 = int_to_ptr.vmem [resolvable:$true] %s32
      %38 = dma.hbm_to_vmem [thread:$0]  %s1, 1024, %s33, [#allocation6], 64, 64, 4
    $region9: #{tpu_custom_call.1} parent=1 // pred_fallthru
      _
    // Predicated region
    $region10: #{tpu_custom_call.1} parent=1 // pred_check
      _
    $region11: #{tpu_custom_call.1} parent=1 // pred_check_branch
      %40 = sbr.rel (0) target = $region13
    $region12: #{tpu_custom_call.1} parent=1 // pred_region
      %s42 = ssub.s32 1024, 1024
      %43 = vsyncadd [#allocation6], %s42
      %s44 = sshll.u32 [#allocation7], 4
      %s45 = int_to_ptr.vmem [resolvable:$true] %s44
      %50 = dma.hbm_to_vmem [thread:$0]  %s2, 1024, %s45, [#allocation6], 64, 64, 4
    $region13: #{tpu_custom_call.1} parent=1 // pred_fallthru
      _
    // Predicated region
    $region14: #{tpu_custom_call.1} parent=1 // pred_check
      _
    $region15: #{tpu_custom_call.1} parent=1 // pred_check_branch
      %52 = sbr.rel (0) target = $region17
    $region16: #{tpu_custom_call.1} parent=1 // pred_region
      _
    $region17: #{tpu_custom_call.1} parent=1 // pred_fallthru
      _
    // Predicated region
    $region18: #{tpu_custom_call.1} parent=1 // pred_check
      _
    $region19: #{tpu_custom_call.1} parent=1 // pred_check_branch
      %54 = sbr.rel (0) target = $region21
    $region20: #{tpu_custom_call.1} parent=1 // pred_region
      %s56 = ssub.s32 1024, 1024
      %57 = vsyncadd [#allocation9], %s56
      %s58 = sshll.u32 [#allocation8], 4
      %s59 = int_to_ptr.vmem [resolvable:$true] %s58
      %64 = dma.hbm_to_vmem [thread:$0]  %s4, 1024, %s59, [#allocation9], 64, 64, 4
    $region21: #{tpu_custom_call.1} parent=1 // pred_fallthru
      _
    // Predicated region
    $region22: #{tpu_custom_call.1} parent=1 // pred_check
      _
    $region23: #{tpu_custom_call.1} parent=1 // pred_check_branch
      %66 = sbr.rel (0) target = $region25
    $region24: #{tpu_custom_call.1} parent=1 // pred_region
      _
    $region25: #{tpu_custom_call.1} parent=1 // pred_fallthru
      _
    // Predicated region
    $region26: #{tpu_custom_call.1} parent=1 // pred_check
      _
    $region27: #{tpu_custom_call.1} parent=1 // pred_check_branch
      %68 = sbr.rel (0) target = $region29
    $region28: #{tpu_custom_call.1} parent=1 // pred_region
      %69 = dma.done [#allocation3], 1024
    $region29: #{tpu_custom_call.1} parent=1 // pred_fallthru
      _
    // Predicated region
    $region30: #{tpu_custom_call.1} parent=1 // pred_check
      _
    $region31: #{tpu_custom_call.1} parent=1 // pred_check_branch
      %71 = sbr.rel (0) target = $region33
    $region32: #{tpu_custom_call.1} parent=1 // pred_region
      %72 = dma.done [#allocation6], 1024
    $region33: #{tpu_custom_call.1} parent=1 // pred_fallthru
      _
    // Predicated region
    $region34: #{tpu_custom_call.1} parent=1 // pred_check
      _
    $region35: #{tpu_custom_call.1} parent=1 // pred_check_branch
      %74 = sbr.rel (0) target = $region37
    $region36: #{tpu_custom_call.1} parent=1 // pred_region
      %75 = dma.done [#allocation6], 1024
    $region37: #{tpu_custom_call.1} parent=1 // pred_fallthru
      _
    // Predicated region
    $region38: #{tpu_custom_call.1} parent=1 // pred_check
      _
    $region39: #{tpu_custom_call.1} parent=1 // pred_check_branch
      %77 = sbr.rel (0) target = $region41
    $region40: #{tpu_custom_call.1} parent=1 // pred_region
      %78 = dma.done [#allocation9], 1024
    $region41: #{tpu_custom_call.1} parent=1 // pred_fallthru
      _
    %v80 = vld [vmem:[#allocation5] sm:$0xf]
    %v81 = vld [vmem:[#allocation5 + $0x4] sm:$0xf]
    %v82 = vld [vmem:[#allocation5 + $0x8] sm:$0xf]
    %v83 = vld [vmem:[#allocation5 + $0xc] sm:$0xf]
    %v84 = vld [vmem:[#allocation5 + $0x10] sm:$0xf]
    %v85 = vld [vmem:[#allocation5 + $0x14] sm:$0xf]
    %v86 = vld [vmem:[#allocation5 + $0x18] sm:$0xf]
    %v87 = vld [vmem:[#allocation5 + $0x1c] sm:$0xf]
    %v88 = vld [vmem:[#allocation5 + $0x20] sm:$0xf]
    %v89 = vld [vmem:[#allocation5 + $0x24] sm:$0xf]
    %v90 = vld [vmem:[#allocation5 + $0x28] sm:$0xf]
    %v91 = vld [vmem:[#allocation5 + $0x2c] sm:$0xf]
    %v92 = vld [vmem:[#allocation5 + $0x30] sm:$0xf]
    %v93 = vld [vmem:[#allocation5 + $0x34] sm:$0xf]
    %v94 = vld [vmem:[#allocation5 + $0x38] sm:$0xf]
    %v95 = vld [vmem:[#allocation5 + $0x3c] sm:$0xf]
    %v96 = vld [vmem:[#allocation2] sm:$0xf]
    %v97 = vld [vmem:[#allocation2 + $0x4] sm:$0xf]
    %v98 = vld [vmem:[#allocation2 + $0x8] sm:$0xf]
    %v99 = vld [vmem:[#allocation2 + $0xc] sm:$0xf]
    %v100 = vld [vmem:[#allocation2 + $0x10] sm:$0xf]
    %v101 = vld [vmem:[#allocation2 + $0x14] sm:$0xf]
    %v102 = vld [vmem:[#allocation2 + $0x18] sm:$0xf]
    %v103 = vld [vmem:[#allocation2 + $0x1c] sm:$0xf]
    %v104 = vld [vmem:[#allocation2 + $0x20] sm:$0xf]
    %v105 = vld [vmem:[#allocation2 + $0x24] sm:$0xf]
    %v106 = vld [vmem:[#allocation2 + $0x28] sm:$0xf]
    %v107 = vld [vmem:[#allocation2 + $0x2c] sm:$0xf]
    %v108 = vld [vmem:[#allocation2 + $0x30] sm:$0xf]
    %v109 = vld [vmem:[#allocation2 + $0x34] sm:$0xf]
    %v110 = vld [vmem:[#allocation2 + $0x38] sm:$0xf]
    %v111 = vld [vmem:[#allocation2 + $0x3c] sm:$0xf]
    %v128 = vunpack.c.l.b16 %v96
    %v129 = vunpack.c.l.b16 %v97
    %v130 = vunpack.c.l.b16 %v98
    %v131 = vunpack.c.l.b16 %v99
    %v132 = vunpack.c.l.b16 %v100
    %v133 = vunpack.c.l.b16 %v101
    %v134 = vunpack.c.l.b16 %v102
    %v135 = vunpack.c.l.b16 %v103
    %v136 = vunpack.c.l.b16 %v104
    %v137 = vunpack.c.l.b16 %v105
    %v138 = vunpack.c.l.b16 %v106
    %v139 = vunpack.c.l.b16 %v107
    %v140 = vunpack.c.l.b16 %v108
    %v141 = vunpack.c.l.b16 %v109
    %v142 = vunpack.c.l.b16 %v110
    %v143 = vunpack.c.l.b16 %v111
    %v144 = vpack.c.b16 %v129, %v128
    %v145 = vpack.c.b16 %v131, %v130
    %v146 = vpack.c.b16 %v133, %v132
    %v147 = vpack.c.b16 %v135, %v134
    %v148 = vpack.c.b16 %v137, %v136
    %v149 = vpack.c.b16 %v139, %v138
    %v150 = vpack.c.b16 %v141, %v140
    %v151 = vpack.c.b16 %v143, %v142
    %v176 = vunpack.c.l.b16 %v80
    %v177 = vunpack.c.l.b16 %v81
    %v178 = vunpack.c.l.b16 %v82
    %v179 = vunpack.c.l.b16 %v83
    %v180 = vunpack.c.l.b16 %v84
    %v181 = vunpack.c.l.b16 %v85
    %v182 = vunpack.c.l.b16 %v86
    %v183 = vunpack.c.l.b16 %v87
    %v184 = vunpack.c.l.b16 %v88
    %v185 = vunpack.c.l.b16 %v89
    %v186 = vunpack.c.l.b16 %v90
    %v187 = vunpack.c.l.b16 %v91
    %v188 = vunpack.c.l.b16 %v92
    %v189 = vunpack.c.l.b16 %v93
    %v190 = vunpack.c.l.b16 %v94
    %v191 = vunpack.c.l.b16 %v95
    %v192 = vpack.c.b16 %v177, %v176
    %v193 = vpack.c.b16 %v179, %v178
    %v194 = vpack.c.b16 %v181, %v180
    %v195 = vpack.c.b16 %v183, %v182
    %v196 = vpack.c.b16 %v185, %v184
    %v197 = vpack.c.b16 %v187, %v186
    %v198 = vpack.c.b16 %v189, %v188
    %v199 = vpack.c.b16 %v191, %v190
    %208 = vmatprep.subr.bf16.mxu0 0
    %209 = vmatpush1.bf16.msra.mxu0 %v192
    %210 = vmatprep.subr.bf16.mxu0 0
    %211 = vmatpush1.bf16.msra.mxu0 %v193
    %212 = vmatprep.subr.bf16.mxu0 0
    %213 = vmatpush1.bf16.msra.mxu0 %v194
    %214 = vmatprep.subr.bf16.mxu0 0
    %215 = vmatpush1.bf16.msra.mxu0 %v195
    %216 = vmatprep.subr.bf16.mxu0 0
    %217 = vmatpush1.bf16.msra.mxu0 %v196
    %218 = vmatprep.subr.bf16.mxu0 0
    %219 = vmatpush1.bf16.msra.mxu0 %v197
    %220 = vmatprep.subr.bf16.mxu0 0
    %221 = vmatpush1.bf16.msra.mxu0 %v198
    %222 = vmatprep.subr.bf16.mxu0 0
    %223 = vmatpush1.bf16.msra.mxu0 %v199
    %224 = vmatprep.subr.bf16.mxu0 0
    %225 = vmatpush1.bf16.msra.mxu0 0
    %226 = vmatprep.subr.bf16.mxu0 0
    %227 = vmatpush1.bf16.msra.mxu0 0
    %228 = vmatprep.subr.bf16.mxu0 0
    %229 = vmatpush1.bf16.msra.mxu0 0
    %230 = vmatprep.subr.bf16.mxu0 0
    %231 = vmatpush1.bf16.msra.mxu0 0
    %232 = vmatprep.subr.bf16.mxu0 0
    %233 = vmatpush1.bf16.msra.mxu0 0
    %234 = vmatprep.subr.bf16.mxu0 0
    %235 = vmatpush1.bf16.msra.mxu0 0
    %236 = vmatprep.subr.bf16.mxu0 0
    %237 = vmatpush1.bf16.msra.mxu0 0
    %238 = vmatprep.subr.bf16.mxu0 0
    %239 = vmatpush1.bf16.msra.mxu0 0
    %240 = vmatprep.mubr.bf16.mxu0 0
    %241 = vmatmul.mubr.bf16.gmra.mrb[0].mxu0 %v144
    %v242 = vpop.f32.mrb[0].mxu0
    %v243 = vadd.f32 0.0, %v242
    %v244 = vpop.f32.mrb[0].mxu0
    %v245 = vpop.f32.mrb[0].mxu0
    %v246 = vadd.f32 0.0, %v245
    %v247 = vpop.f32.mrb[0].mxu0
    %248 = vmatprep.mubr.bf16.mxu0 0
    %249 = vmatmul.mubr.bf16.gmra.mrb[0].mxu0 %v145
    %v250 = vpop.f32.mrb[0].mxu0
    %v251 = vadd.f32 0.0, %v250
    %v252 = vpop.f32.mrb[0].mxu0
    %v253 = vpop.f32.mrb[0].mxu0
    %v254 = vadd.f32 0.0, %v253
    %v255 = vpop.f32.mrb[0].mxu0
    %256 = vmatprep.mubr.bf16.mxu0 0
    %257 = vmatmul.mubr.bf16.gmra.mrb[0].mxu0 %v146
    %v258 = vpop.f32.mrb[0].mxu0
    %v259 = vadd.f32 0.0, %v258
    %v260 = vpop.f32.mrb[0].mxu0
    %v261 = vpop.f32.mrb[0].mxu0
    %v262 = vadd.f32 0.0, %v261
    %v263 = vpop.f32.mrb[0].mxu0
    %264 = vmatprep.mubr.bf16.mxu0 0
    %265 = vmatmul.mubr.bf16.gmra.mrb[0].mxu0 %v147
    %v266 = vpop.f32.mrb[0].mxu0
    %v267 = vadd.f32 0.0, %v266
    %v268 = vpop.f32.mrb[0].mxu0
    %v269 = vpop.f32.mrb[0].mxu0
    %v270 = vadd.f32 0.0, %v269
    %v271 = vpop.f32.mrb[0].mxu0
    %272 = vmatprep.mubr.bf16.mxu0 0
    %273 = vmatmul.mubr.bf16.gmra.mrb[0].mxu0 %v148
    %v274 = vpop.f32.mrb[0].mxu0
    %v275 = vadd.f32 0.0, %v274
    %v276 = vpop.f32.mrb[0].mxu0
    %v277 = vpop.f32.mrb[0].mxu0
    %v278 = vadd.f32 0.0, %v277
    %v279 = vpop.f32.mrb[0].mxu0
    %280 = vmatprep.mubr.bf16.mxu0 0
    %281 = vmatmul.mubr.bf16.gmra.mrb[0].mxu0 %v149
    %v282 = vpop.f32.mrb[0].mxu0
    %v283 = vadd.f32 0.0, %v282
    %v284 = vpop.f32.mrb[0].mxu0
    %v285 = vpop.f32.mrb[0].mxu0
    %v286 = vadd.f32 0.0, %v285
    %v287 = vpop.f32.mrb[0].mxu0
    %288 = vmatprep.mubr.bf16.mxu0 0
    %289 = vmatmul.mubr.bf16.gmra.mrb[0].mxu0 %v150
    %v290 = vpop.f32.mrb[0].mxu0
    %v291 = vadd.f32 0.0, %v290
    %v292 = vpop.f32.mrb[0].mxu0
    %v293 = vpop.f32.mrb[0].mxu0
    %v294 = vadd.f32 0.0, %v293
    %v295 = vpop.f32.mrb[0].mxu0
    %296 = vmatprep.mubr.bf16.mxu0 0
    %297 = vmatmul.mubr.bf16.gmra.mrb[0].mxu0 %v151
    %v298 = vpop.f32.mrb[0].mxu0
    %v299 = vadd.f32 0.0, %v298
    %v300 = vpop.f32.mrb[0].mxu0
    %v301 = vpop.f32.mrb[0].mxu0
    %v302 = vadd.f32 0.0, %v301
    %v303 = vpop.f32.mrb[0].mxu0
    %304 = vdwg.mxu0
    %v305 = vunpack.c.l.bf16 %v80
    %v306 = vunpack.c.l.bf16 %v81
    %v307 = vunpack.c.l.bf16 %v82
    %v308 = vunpack.c.l.bf16 %v83
    %v309 = vunpack.c.l.bf16 %v84
    %v310 = vunpack.c.l.bf16 %v85
    %v311 = vunpack.c.l.bf16 %v86
    %v312 = vunpack.c.l.bf16 %v87
    %v313 = vunpack.c.l.bf16 %v88
    %v314 = vunpack.c.l.bf16 %v89
    %v315 = vunpack.c.l.bf16 %v90
    %v316 = vunpack.c.l.bf16 %v91
    %v317 = vunpack.c.l.bf16 %v92
    %v318 = vunpack.c.l.bf16 %v93
    %v319 = vunpack.c.l.bf16 %v94
    %v320 = vunpack.c.l.bf16 %v95
    %v321 = vadd.f32 %v305, %v243
    %v322 = vadd.f32 %v306, %v246
    %v323 = vadd.f32 %v307, %v251
    %v324 = vadd.f32 %v308, %v254
    %v325 = vadd.f32 %v309, %v259
    %v326 = vadd.f32 %v310, %v262
    %v327 = vadd.f32 %v311, %v267
    %v328 = vadd.f32 %v312, %v270
    %v329 = vadd.f32 %v313, %v275
    %v330 = vadd.f32 %v314, %v278
    %v331 = vadd.f32 %v315, %v283
    %v332 = vadd.f32 %v316, %v286
    %v333 = vadd.f32 %v317, %v291
    %v334 = vadd.f32 %v318, %v294
    %v335 = vadd.f32 %v319, %v299
    %v336 = vadd.f32 %v320, %v302
    %v337 = vpack.c.bf16 %v322, %v321
    %v338 = vpack.c.bf16 %v324, %v323
    %v339 = vpack.c.bf16 %v326, %v325
    %v340 = vpack.c.bf16 %v328, %v327
    %v341 = vpack.c.bf16 %v330, %v329
    %v342 = vpack.c.bf16 %v332, %v331
    %v343 = vpack.c.bf16 %v334, %v333
    %v344 = vpack.c.bf16 %v336, %v335
    %v345 = vld [vmem:[#allocation7] sm:$0xf]
    %v346 = vld [vmem:[#allocation7 + $0x4] sm:$0xf]
    %v347 = vld [vmem:[#allocation7 + $0x8] sm:$0xf]
    %v348 = vld [vmem:[#allocation7 + $0xc] sm:$0xf]
    %v349 = vld [vmem:[#allocation7 + $0x10] sm:$0xf]
    %v350 = vld [vmem:[#allocation7 + $0x14] sm:$0xf]
    %v351 = vld [vmem:[#allocation7 + $0x18] sm:$0xf]
    %v352 = vld [vmem:[#allocation7 + $0x1c] sm:$0xf]
    %v353 = vld [vmem:[#allocation7 + $0x20] sm:$0xf]
    %v354 = vld [vmem:[#allocation7 + $0x24] sm:$0xf]
    %v355 = vld [vmem:[#allocation7 + $0x28] sm:$0xf]
    %v356 = vld [vmem:[#allocation7 + $0x2c] sm:$0xf]
    %v357 = vld [vmem:[#allocation7 + $0x30] sm:$0xf]
    %v358 = vld [vmem:[#allocation7 + $0x34] sm:$0xf]
    %v359 = vld [vmem:[#allocation7 + $0x38] sm:$0xf]
    %v360 = vld [vmem:[#allocation7 + $0x3c] sm:$0xf]
    %v361 = vld [vmem:[%s3] sm:$0x1]
    %v363 = vlaneseq
    %v364 = vshrl.u32 %v363, 7
    %v365 = vsub.s32 0, %v364
    %v366 = vrot.slane %v361, %v365
    %v384 = vunpack.c.l.b16 %v345
    %v385 = vunpack.c.l.b16 %v346
    %v386 = vunpack.c.l.b16 %v347
    %v387 = vunpack.c.l.b16 %v348
    %v388 = vunpack.c.l.b16 %v349
    %v389 = vunpack.c.l.b16 %v350
    %v390 = vunpack.c.l.b16 %v351
    %v391 = vunpack.c.l.b16 %v352
    %v392 = vunpack.c.l.b16 %v353
    %v393 = vunpack.c.l.b16 %v354
    %v394 = vunpack.c.l.b16 %v355
    %v395 = vunpack.c.l.b16 %v356
    %v396 = vunpack.c.l.b16 %v357
    %v397 = vunpack.c.l.b16 %v358
    %v398 = vunpack.c.l.b16 %v359
    %v399 = vunpack.c.l.b16 %v360
    %v400 = vpack.c.b16 %v385, %v384
    %v401 = vpack.c.b16 %v387, %v386
    %v402 = vpack.c.b16 %v389, %v388
    %v403 = vpack.c.b16 %v391, %v390
    %v404 = vpack.c.b16 %v393, %v392
    %v405 = vpack.c.b16 %v395, %v394
    %v406 = vpack.c.b16 %v397, %v396
    %v407 = vpack.c.b16 %v399, %v398
    %416 = vmatprep.subr.bf16.mxu0 0
    %417 = vmatpush1.bf16.msra.mxu0 %v400
    %418 = vmatprep.subr.bf16.mxu0 0
    %419 = vmatpush1.bf16.msra.mxu0 %v401
    %420 = vmatprep.subr.bf16.mxu0 0
    %421 = vmatpush1.bf16.msra.mxu0 %v402
    %422 = vmatprep.subr.bf16.mxu0 0
    %423 = vmatpush1.bf16.msra.mxu0 %v403
    %424 = vmatprep.subr.bf16.mxu0 0
    %425 = vmatpush1.bf16.msra.mxu0 %v404
    %426 = vmatprep.subr.bf16.mxu0 0
    %427 = vmatpush1.bf16.msra.mxu0 %v405
    %428 = vmatprep.subr.bf16.mxu0 0
    %429 = vmatpush1.bf16.msra.mxu0 %v406
    %430 = vmatprep.subr.bf16.mxu0 0
    %431 = vmatpush1.bf16.msra.mxu0 %v407
    %432 = vmatprep.subr.bf16.mxu0 0
    %433 = vmatpush1.bf16.msra.mxu0 0
    %434 = vmatprep.subr.bf16.mxu0 0
    %435 = vmatpush1.bf16.msra.mxu0 0
    %436 = vmatprep.subr.bf16.mxu0 0
    %437 = vmatpush1.bf16.msra.mxu0 0
    %438 = vmatprep.subr.bf16.mxu0 0
    %439 = vmatpush1.bf16.msra.mxu0 0
    %440 = vmatprep.subr.bf16.mxu0 0
    %441 = vmatpush1.bf16.msra.mxu0 0
    %442 = vmatprep.subr.bf16.mxu0 0
    %443 = vmatpush1.bf16.msra.mxu0 0
    %444 = vmatprep.subr.bf16.mxu0 0
    %445 = vmatpush1.bf16.msra.mxu0 0
    %446 = vmatprep.subr.bf16.mxu0 0
    %447 = vmatpush1.bf16.msra.mxu0 0
    %448 = vmatprep.mubr.bf16.mxu0 0
    %449 = vmatmul.mubr.bf16.gmra.mrb[0].mxu0 %v337
    %v450 = vpop.f32.mrb[0].mxu0
    %v451 = vadd.f32 %v366, %v450
    %v452 = vpop.f32.mrb[0].mxu0
    %v453 = vpop.f32.mrb[0].mxu0
    %v454 = vadd.f32 %v366, %v453
    %v455 = vpop.f32.mrb[0].mxu0
    %456 = vmatprep.mubr.bf16.mxu0 0
    %457 = vmatmul.mubr.bf16.gmra.mrb[0].mxu0 %v338
    %v458 = vpop.f32.mrb[0].mxu0
    %v459 = vadd.f32 %v366, %v458
    %v460 = vpop.f32.mrb[0].mxu0
    %v461 = vpop.f32.mrb[0].mxu0
    %v462 = vadd.f32 %v366, %v461
    %v463 = vpop.f32.mrb[0].mxu0
    %464 = vmatprep.mubr.bf16.mxu0 0
    %465 = vmatmul.mubr.bf16.gmra.mrb[0].mxu0 %v339
    %v466 = vpop.f32.mrb[0].mxu0
    %v467 = vadd.f32 %v366, %v466
    %v468 = vpop.f32.mrb[0].mxu0
    %v469 = vpop.f32.mrb[0].mxu0
    %v470 = vadd.f32 %v366, %v469
    %v471 = vpop.f32.mrb[0].mxu0
    %472 = vmatprep.mubr.bf16.mxu0 0
    %473 = vmatmul.mubr.bf16.gmra.mrb[0].mxu0 %v340
    %v474 = vpop.f32.mrb[0].mxu0
    %v475 = vadd.f32 %v366, %v474
    %v476 = vpop.f32.mrb[0].mxu0
    %v477 = vpop.f32.mrb[0].mxu0
    %v478 = vadd.f32 %v366, %v477
    %v479 = vpop.f32.mrb[0].mxu0
    %480 = vmatprep.mubr.bf16.mxu0 0
    %481 = vmatmul.mubr.bf16.gmra.mrb[0].mxu0 %v341
    %v482 = vpop.f32.mrb[0].mxu0
    %v483 = vadd.f32 %v366, %v482
    %v484 = vpop.f32.mrb[0].mxu0
    %v485 = vpop.f32.mrb[0].mxu0
    %v486 = vadd.f32 %v366, %v485
    %v487 = vpop.f32.mrb[0].mxu0
    %488 = vmatprep.mubr.bf16.mxu0 0
    %489 = vmatmul.mubr.bf16.gmra.mrb[0].mxu0 %v342
    %v490 = vpop.f32.mrb[0].mxu0
    %v491 = vadd.f32 %v366, %v490
    %v492 = vpop.f32.mrb[0].mxu0
    %v493 = vpop.f32.mrb[0].mxu0
    %v494 = vadd.f32 %v366, %v493
    %v495 = vpop.f32.mrb[0].mxu0
    %496 = vmatprep.mubr.bf16.mxu0 0
    %497 = vmatmul.mubr.bf16.gmra.mrb[0].mxu0 %v343
    %v498 = vpop.f32.mrb[0].mxu0
    %v499 = vadd.f32 %v366, %v498
    %v500 = vpop.f32.mrb[0].mxu0
    %v501 = vpop.f32.mrb[0].mxu0
    %v502 = vadd.f32 %v366, %v501
    %v503 = vpop.f32.mrb[0].mxu0
    %504 = vmatprep.mubr.bf16.mxu0 0
    %505 = vmatmul.mubr.bf16.gmra.mrb[0].mxu0 %v344
    %v506 = vpop.f32.mrb[0].mxu0
    %v507 = vadd.f32 %v366, %v506
    %v508 = vpop.f32.mrb[0].mxu0
    %v509 = vpop.f32.mrb[0].mxu0
    %v510 = vadd.f32 %v366, %v509
    %v511 = vpop.f32.mrb[0].mxu0
    %512 = vdwg.mxu0
    %v513 = vmax.f32 %v451, 0.0
    %v514 = vmax.f32 %v454, 0.0
    %v515 = vmax.f32 %v459, 0.0
    %v516 = vmax.f32 %v462, 0.0
    %v517 = vmax.f32 %v467, 0.0
    %v518 = vmax.f32 %v470, 0.0
    %v519 = vmax.f32 %v475, 0.0
    %v520 = vmax.f32 %v478, 0.0
    %v521 = vmax.f32 %v483, 0.0
    %v522 = vmax.f32 %v486, 0.0
    %v523 = vmax.f32 %v491, 0.0
    %v524 = vmax.f32 %v494, 0.0
    %v525 = vmax.f32 %v499, 0.0
    %v526 = vmax.f32 %v502, 0.0
    %v527 = vmax.f32 %v507, 0.0
    %v528 = vmax.f32 %v510, 0.0
    %v529 = vpack.c.bf16 %v514, %v513
    %v530 = vpack.c.bf16 %v516, %v515
    %v531 = vpack.c.bf16 %v518, %v517
    %v532 = vpack.c.bf16 %v520, %v519
    %v533 = vpack.c.bf16 %v522, %v521
    %v534 = vpack.c.bf16 %v524, %v523
    %v535 = vpack.c.bf16 %v526, %v525
    %v536 = vpack.c.bf16 %v528, %v527
    %v537 = vld [vmem:[#allocation8] sm:$0xf]
    %v538 = vld [vmem:[#allocation8 + $0x4] sm:$0xf]
    %v539 = vld [vmem:[#allocation8 + $0x8] sm:$0xf]
    %v540 = vld [vmem:[#allocation8 + $0xc] sm:$0xf]
    %v541 = vld [vmem:[#allocation8 + $0x10] sm:$0xf]
    %v542 = vld [vmem:[#allocation8 + $0x14] sm:$0xf]
    %v543 = vld [vmem:[#allocation8 + $0x18] sm:$0xf]
    %v544 = vld [vmem:[#allocation8 + $0x1c] sm:$0xf]
    %v545 = vld [vmem:[#allocation8 + $0x20] sm:$0xf]
    %v546 = vld [vmem:[#allocation8 + $0x24] sm:$0xf]
    %v547 = vld [vmem:[#allocation8 + $0x28] sm:$0xf]
    %v548 = vld [vmem:[#allocation8 + $0x2c] sm:$0xf]
    %v549 = vld [vmem:[#allocation8 + $0x30] sm:$0xf]
    %v550 = vld [vmem:[#allocation8 + $0x34] sm:$0xf]
    %v551 = vld [vmem:[#allocation8 + $0x38] sm:$0xf]
    %v552 = vld [vmem:[#allocation8 + $0x3c] sm:$0xf]
    %v553 = vld [vmem:[%s5] sm:$0x1]
    %v555 = vlaneseq
    %v556 = vshrl.u32 %v555, 7
    %v557 = vsub.s32 0, %v556
    %v558 = vrot.slane %v553, %v557
    %v576 = vunpack.c.l.b16 %v537
    %v577 = vunpack.c.l.b16 %v538
    %v578 = vunpack.c.l.b16 %v539
    %v579 = vunpack.c.l.b16 %v540
    %v580 = vunpack.c.l.b16 %v541
    %v581 = vunpack.c.l.b16 %v542
    %v582 = vunpack.c.l.b16 %v543
    %v583 = vunpack.c.l.b16 %v544
    %v584 = vunpack.c.l.b16 %v545
    %v585 = vunpack.c.l.b16 %v546
    %v586 = vunpack.c.l.b16 %v547
    %v587 = vunpack.c.l.b16 %v548
    %v588 = vunpack.c.l.b16 %v549
    %v589 = vunpack.c.l.b16 %v550
    %v590 = vunpack.c.l.b16 %v551
    %v591 = vunpack.c.l.b16 %v552
    %v592 = vpack.c.b16 %v577, %v576
    %v593 = vpack.c.b16 %v579, %v578
    %v594 = vpack.c.b16 %v581, %v580
    %v595 = vpack.c.b16 %v583, %v582
    %v596 = vpack.c.b16 %v585, %v584
    %v597 = vpack.c.b16 %v587, %v586
    %v598 = vpack.c.b16 %v589, %v588
    %v599 = vpack.c.b16 %v591, %v590
    %608 = vmatprep.subr.bf16.mxu0 0
    %609 = vmatpush1.bf16.msra.mxu0 %v592
    %610 = vmatprep.subr.bf16.mxu0 0
    %611 = vmatpush1.bf16.msra.mxu0 %v593
    %612 = vmatprep.subr.bf16.mxu0 0
    %613 = vmatpush1.bf16.msra.mxu0 %v594
    %614 = vmatprep.subr.bf16.mxu0 0
    %615 = vmatpush1.bf16.msra.mxu0 %v595
    %616 = vmatprep.subr.bf16.mxu0 0
    %617 = vmatpush1.bf16.msra.mxu0 %v596
    %618 = vmatprep.subr.bf16.mxu0 0
    %619 = vmatpush1.bf16.msra.mxu0 %v597
    %620 = vmatprep.subr.bf16.mxu0 0
    %621 = vmatpush1.bf16.msra.mxu0 %v598
    %622 = vmatprep.subr.bf16.mxu0 0
    %623 = vmatpush1.bf16.msra.mxu0 %v599
    %624 = vmatprep.subr.bf16.mxu0 0
    %625 = vmatpush1.bf16.msra.mxu0 0
    %626 = vmatprep.subr.bf16.mxu0 0
    %627 = vmatpush1.bf16.msra.mxu0 0
    %628 = vmatprep.subr.bf16.mxu0 0
    %629 = vmatpush1.bf16.msra.mxu0 0
    %630 = vmatprep.subr.bf16.mxu0 0
    %631 = vmatpush1.bf16.msra.mxu0 0
    %632 = vmatprep.subr.bf16.mxu0 0
    %633 = vmatpush1.bf16.msra.mxu0 0
    %634 = vmatprep.subr.bf16.mxu0 0
    %635 = vmatpush1.bf16.msra.mxu0 0
    %636 = vmatprep.subr.bf16.mxu0 0
    %637 = vmatpush1.bf16.msra.mxu0 0
    %638 = vmatprep.subr.bf16.mxu0 0
    %639 = vmatpush1.bf16.msra.mxu0 0
    %640 = vmatprep.mubr.bf16.mxu0 0
    %641 = vmatmul.mubr.bf16.gmra.mrb[0].mxu0 %v529
    %v642 = vpop.f32.mrb[0].mxu0
    %v643 = vadd.f32 %v558, %v642
    %v644 = vpop.f32.mrb[0].mxu0
    %v645 = vpop.f32.mrb[0].mxu0
    %v646 = vadd.f32 %v558, %v645
    %v647 = vpop.f32.mrb[0].mxu0
    %648 = vmatprep.mubr.bf16.mxu0 0
    %649 = vmatmul.mubr.bf16.gmra.mrb[0].mxu0 %v530
    %v650 = vpop.f32.mrb[0].mxu0
    %v651 = vadd.f32 %v558, %v650
    %v652 = vpop.f32.mrb[0].mxu0
    %v653 = vpop.f32.mrb[0].mxu0
    %v654 = vadd.f32 %v558, %v653
    %v655 = vpop.f32.mrb[0].mxu0
    %656 = vmatprep.mubr.bf16.mxu0 0
    %657 = vmatmul.mubr.bf16.gmra.mrb[0].mxu0 %v531
    %v658 = vpop.f32.mrb[0].mxu0
    %v659 = vadd.f32 %v558, %v658
    %v660 = vpop.f32.mrb[0].mxu0
    %v661 = vpop.f32.mrb[0].mxu0
    %v662 = vadd.f32 %v558, %v661
    %v663 = vpop.f32.mrb[0].mxu0
    %664 = vmatprep.mubr.bf16.mxu0 0
    %665 = vmatmul.mubr.bf16.gmra.mrb[0].mxu0 %v532
    %v666 = vpop.f32.mrb[0].mxu0
    %v667 = vadd.f32 %v558, %v666
    %v668 = vpop.f32.mrb[0].mxu0
    %v669 = vpop.f32.mrb[0].mxu0
    %v670 = vadd.f32 %v558, %v669
    %v671 = vpop.f32.mrb[0].mxu0
    %672 = vmatprep.mubr.bf16.mxu0 0
    %673 = vmatmul.mubr.bf16.gmra.mrb[0].mxu0 %v533
    %v674 = vpop.f32.mrb[0].mxu0
    %v675 = vadd.f32 %v558, %v674
    %v676 = vpop.f32.mrb[0].mxu0
    %v677 = vpop.f32.mrb[0].mxu0
    %v678 = vadd.f32 %v558, %v677
    %v679 = vpop.f32.mrb[0].mxu0
    %680 = vmatprep.mubr.bf16.mxu0 0
    %681 = vmatmul.mubr.bf16.gmra.mrb[0].mxu0 %v534
    %v682 = vpop.f32.mrb[0].mxu0
    %v683 = vadd.f32 %v558, %v682
    %v684 = vpop.f32.mrb[0].mxu0
    %v685 = vpop.f32.mrb[0].mxu0
    %v686 = vadd.f32 %v558, %v685
    %v687 = vpop.f32.mrb[0].mxu0
    %688 = vmatprep.mubr.bf16.mxu0 0
    %689 = vmatmul.mubr.bf16.gmra.mrb[0].mxu0 %v535
    %v690 = vpop.f32.mrb[0].mxu0
    %v691 = vadd.f32 %v558, %v690
    %v692 = vpop.f32.mrb[0].mxu0
    %v693 = vpop.f32.mrb[0].mxu0
    %v694 = vadd.f32 %v558, %v693
    %v695 = vpop.f32.mrb[0].mxu0
    %696 = vmatprep.mubr.bf16.mxu0 0
    %697 = vmatmul.mubr.bf16.gmra.mrb[0].mxu0 %v536
    %v698 = vpop.f32.mrb[0].mxu0
    %v699 = vadd.f32 %v558, %v698
    %v700 = vpop.f32.mrb[0].mxu0
    %v701 = vpop.f32.mrb[0].mxu0
    %v702 = vadd.f32 %v558, %v701
    %v703 = vpop.f32.mrb[0].mxu0
    %704 = vdwg.mxu0
    %v705 = vmax.f32 %v643, 0.0
    %v706 = vmax.f32 %v646, 0.0
    %v707 = vmax.f32 %v651, 0.0
    %v708 = vmax.f32 %v654, 0.0
    %v709 = vmax.f32 %v659, 0.0
    %v710 = vmax.f32 %v662, 0.0
    %v711 = vmax.f32 %v667, 0.0
    %v712 = vmax.f32 %v670, 0.0
    %v713 = vmax.f32 %v675, 0.0
    %v714 = vmax.f32 %v678, 0.0
    %v715 = vmax.f32 %v683, 0.0
    %v716 = vmax.f32 %v686, 0.0
    %v717 = vmax.f32 %v691, 0.0
    %v718 = vmax.f32 %v694, 0.0
    %v719 = vmax.f32 %v699, 0.0
    %v720 = vmax.f32 %v702, 0.0
    %v721 = vpack.c.bf16 %v706, %v705
    %v722 = vpack.c.bf16 %v708, %v707
    %v723 = vpack.c.bf16 %v710, %v709
    %v724 = vpack.c.bf16 %v712, %v711
    %v725 = vpack.c.bf16 %v714, %v713
    %v726 = vpack.c.bf16 %v716, %v715
    %v727 = vpack.c.bf16 %v718, %v717
    %v728 = vpack.c.bf16 %v720, %v719
    %v737 = vunpack.c.l.b16 %v721
    %v738 = vunpack.c.h.b16 %v721
    %v739 = vunpack.c.l.b16 %v722
    %v740 = vunpack.c.h.b16 %v722
    %v741 = vunpack.c.l.b16 %v723
    %v742 = vunpack.c.h.b16 %v723
    %v743 = vunpack.c.l.b16 %v724
    %v744 = vunpack.c.h.b16 %v724
    %v745 = vunpack.c.l.b16 %v725
    %v746 = vunpack.c.h.b16 %v725
    %v747 = vunpack.c.l.b16 %v726
    %v748 = vunpack.c.h.b16 %v726
    %v749 = vunpack.c.l.b16 %v727
    %v750 = vunpack.c.h.b16 %v727
    %v751 = vunpack.c.l.b16 %v728
    %v752 = vunpack.c.h.b16 %v728
    %v753 = vpack.c.b16 %v737, %v737
    %v754 = vpack.c.b16 %v738, %v738
    %v755 = vpack.c.b16 %v739, %v739
    %v756 = vpack.c.b16 %v740, %v740
    %v757 = vpack.c.b16 %v741, %v741
    %v758 = vpack.c.b16 %v742, %v742
    %v759 = vpack.c.b16 %v743, %v743
    %v760 = vpack.c.b16 %v744, %v744
    %v761 = vpack.c.b16 %v745, %v745
    %v762 = vpack.c.b16 %v746, %v746
    %v763 = vpack.c.b16 %v747, %v747
    %v764 = vpack.c.b16 %v748, %v748
    %v765 = vpack.c.b16 %v749, %v749
    %v766 = vpack.c.b16 %v750, %v750
    %v767 = vpack.c.b16 %v751, %v751
    %v768 = vpack.c.b16 %v752, %v752
    %785 = vst [vmem:[#allocation10] sm:$0xf] %v753
    %786 = vst [vmem:[#allocation10 + $0x4] sm:$0xf] %v754
    %787 = vst [vmem:[#allocation10 + $0x8] sm:$0xf] %v755
    %788 = vst [vmem:[#allocation10 + $0xc] sm:$0xf] %v756
    %789 = vst [vmem:[#allocation10 + $0x10] sm:$0xf] %v757
    %790 = vst [vmem:[#allocation10 + $0x14] sm:$0xf] %v758
    %791 = vst [vmem:[#allocation10 + $0x18] sm:$0xf] %v759
    %792 = vst [vmem:[#allocation10 + $0x1c] sm:$0xf] %v760
    %793 = vst [vmem:[#allocation10 + $0x20] sm:$0xf] %v761
    %794 = vst [vmem:[#allocation10 + $0x24] sm:$0xf] %v762
    %795 = vst [vmem:[#allocation10 + $0x28] sm:$0xf] %v763
    %796 = vst [vmem:[#allocation10 + $0x2c] sm:$0xf] %v764
    %797 = vst [vmem:[#allocation10 + $0x30] sm:$0xf] %v765
    %798 = vst [vmem:[#allocation10 + $0x34] sm:$0xf] %v766
    %799 = vst [vmem:[#allocation10 + $0x38] sm:$0xf] %v767
    %800 = vst [vmem:[#allocation10 + $0x3c] sm:$0xf] %v768
    // Predicated region
    $region42: #{tpu_custom_call.1} parent=1 // pred_check
      _
    $region43: #{tpu_custom_call.1} parent=1 // pred_check_branch
      %802 = sbr.rel (0) target = $region45
    $region44: #{tpu_custom_call.1} parent=1 // pred_region
      %s804 = ssub.s32 1024, 1024
      %805 = vsyncadd [#allocation4], %s804
      %s806 = sshll.u32 [#allocation10], 4
      %s807 = int_to_ptr.vmem [resolvable:$true] %s806
      %812 = dma.vmem_to_hbm [thread:$0]  %s807, 1024, %s6, [#allocation4], 64, 64, 4
    $region45: #{tpu_custom_call.1} parent=1 // pred_fallthru
      _
    // Predicated region
    $region46: #{tpu_custom_call.1} parent=1 // pred_check
      _
    $region47: #{tpu_custom_call.1} parent=1 // pred_check_branch
      %814 = sbr.rel (0) target = $region49
    $region48: #{tpu_custom_call.1} parent=1 // pred_region
      %815 = dma.done [#allocation4], 1024
    $region49: #{tpu_custom_call.1} parent=1 // pred_fallthru
      _
    %816 = vsyncpa [#allocation3], 1
    %817 = vsyncpa [#allocation6], 1
    %818 = vsyncpa [#allocation9], 1
    %819 = vsyncpa [#allocation4], 1

</llo_original>
